<compile_context>
chip_gen: v7x
topology: tpu7x:2x2x1
jax: 0.10.0
libtpu: 0.0.40
codegen_flags: <defaults>
</compile_context>

<pallas_src>
import math
import functools

import jax
import jax.numpy as jnp
from jax.experimental import pallas as pl
from jax.experimental.pallas import tpu as pltpu


def _bert_attn_group_kernel(x_ref, w_ref, b_ref, mask_ref, out_ref,
                            *, heads_per_group, head_size):
    """One (batch, head-group) tile of BERT self-attention.

    x_ref   : [1, S, H]       hidden states for this batch element
    w_ref   : [1, H, 3*gw]    fused [Wq|Wk|Wv] columns for this head group
    b_ref   : [1, 1, 3*gw]    fused biases for this head group (f32)
    mask_ref: [1, 1, S]       additive attention mask (f32)
    out_ref : [1, S, gw]      output columns for this head group
    """
    gw = heads_per_group * head_size
    x = x_ref[0]                        # [S, H]   (f32 or bf16)
    w = w_ref[0]                        # [H, 3*gw]
    bias = b_ref[0]                     # [1, 3*gw] f32
    mask = mask_ref[0]                  # [1, S]    f32

    # Single fused QKV projection for this head group: one MXU matmul, f32 acc.
    # (1/sqrt(hd) is already folded into the query weights/bias in the wrapper.)
    qkv = jnp.dot(x, w, preferred_element_type=jnp.float32) + bias   # [S, 3*gw]

    ctx_heads = []
    for h in range(heads_per_group):    # statically unrolled (1-2 heads)
        lo = h * head_size
        hi = (h + 1) * head_size
        q = qkv[:, 0 * gw + lo:0 * gw + hi].astype(x.dtype)           # [S, hd]
        k = qkv[:, 1 * gw + lo:1 * gw + hi].astype(x.dtype)           # [S, hd]
        v = qkv[:, 2 * gw + lo:2 * gw + hi].astype(x.dtype)           # [S, hd]

        # q @ k^T with k contracted on its last dim (no explicit transpose;
        # the MXU consumes the transposed rhs directly).
        s = jax.lax.dot_general(q, k, (((1,), (1,)), ((), ())),
                                preferred_element_type=jnp.float32)   # [S, S]
        s = s + mask                    # [1, S] broadcasts over queries

        # Max-subtracted softmax in f32.  Normalization is deferred: divide the
        # small [S, hd] context instead of the [S, S] probabilities; the
        # reciprocal goes to the EUP (separate bundle slot, ~free).
        m = jnp.max(s, axis=-1, keepdims=True)                        # [S, 1]
        p = jnp.exp(s - m)                                            # [S, S]
        l = jnp.sum(p, axis=-1, keepdims=True)                        # [S, 1]

        ctx = jnp.dot(p.astype(x.dtype), v,
                      preferred_element_type=jnp.float32)             # [S, hd]
        ctx_heads.append(ctx * pl.reciprocal(l, approx=True))

    # Assemble the lane-dense [S, gw] slab for this head group; one full store.
    out = ctx_heads[0] if heads_per_group == 1 else jnp.concatenate(
        ctx_heads, axis=-1)
    out_ref[0] = out.astype(out_ref.dtype)


def bert_self_attention(hidden_states, attention_mask, params, *, num_heads,
                        compute_dtype=None):
    """hidden_states: [B, S, H]; attention_mask: [B, 1, 1, S] (additive)."""
    B, S, H = hidden_states.shape
    head_size = H // num_heads

    # Group heads so each group spans ~128 output lanes (lane-dense stores):
    # 2 heads for hd=64 (BERT-base/large), 1 head for hd>=128.
    heads_per_group = max(1, min(num_heads, max(1, 128 // head_size)))
    while num_heads % heads_per_group != 0:
        heads_per_group -= 1
    num_groups = num_heads // heads_per_group
    gw = heads_per_group * head_size

    wq, bq, wk, bk, wv, bv = params        # w*: [H, H] (in, out); b*: [1, H]

    # Fold 1/sqrt(hd) into the query weights/bias once (parameter transform),
    # so the kernel never scales activations.
    scale = 1.0 / math.sqrt(head_size)
    wq = wq * scale
    bq = bq * scale

    def group_w(w):                        # [H, H] -> [G, H, gw]
        return jnp.transpose(w.reshape(H, num_groups, gw), (1, 0, 2))

    def group_b(b):                        # [1, H] -> [G, 1, gw]
        return b.reshape(num_groups, 1, gw)

    # Fused per-group QKV weights/biases: one projection matmul per grid step.
    w_grouped = jnp.concatenate([group_w(wq), group_w(wk), group_w(wv)],
                                axis=-1)                        # [G, H, 3*gw]
    b_grouped = jnp.concatenate([group_b(bq), group_b(bk), group_b(bv)],
                                axis=-1).astype(jnp.float32)    # [G, 1, 3*gw]
    mask3 = attention_mask.reshape(B, 1, S).astype(jnp.float32)

    if compute_dtype is not None:
        # bf16 MXU path: activations/weights bf16, f32 accumulation & softmax.
        hidden_states = hidden_states.astype(compute_dtype)
        w_grouped = w_grouped.astype(compute_dtype)

    kernel = functools.partial(_bert_attn_group_kernel,
                               heads_per_group=heads_per_group,
                               head_size=head_size)

    return pl.pallas_call(
        kernel,
        out_shape=jax.ShapeDtypeStruct((B, S, H), hidden_states.dtype),
        grid=(B, num_groups),
        in_specs=[
            pl.BlockSpec((1, S, H), lambda b, g: (b, 0, 0)),       # x (reused over g)
            pl.BlockSpec((1, H, 3 * gw), lambda b, g: (g, 0, 0)),  # fused QKV weights
            pl.BlockSpec((1, 1, 3 * gw), lambda b, g: (g, 0, 0)),  # fused biases
            pl.BlockSpec((1, 1, S), lambda b, g: (b, 0, 0)),       # additive mask
        ],
        out_specs=pl.BlockSpec((1, S, gw), lambda b, g: (b, 0, g)),
        compiler_params=pltpu.CompilerParams(
            dimension_semantics=("parallel", "parallel")),
    )(hidden_states, w_grouped, b_grouped, mask3)


def reference_attention(hidden_states, attention_mask, params, *, num_heads):
    """Pure-JAX replica of the PyTorch forward for verification."""
    B, S, H = hidden_states.shape
    hd = H // num_heads
    wq, bq, wk, bk, wv, bv = params

    def transform(x, w, b):
        proj = x @ w + b                                      # [B, S, H]
        proj = proj.reshape(B, S, num_heads, hd)
        return jnp.transpose(proj, (0, 2, 1, 3))              # [B, nh, S, hd]

    q = transform(hidden_states, wq, bq)
    k = transform(hidden_states, wk, bk)
    v = transform(hidden_states, wv, bv)

    scores = jnp.einsum("bhqd,bhkd->bhqk", q, k) / math.sqrt(hd)
    scores = scores + attention_mask                           # [B,1,1,S] bcast
    probs = jax.nn.softmax(scores, axis=-1)
    out = jnp.einsum("bhqk,bhkd->bhqd", probs, v)
    out = jnp.transpose(out, (0, 2, 1, 3)).reshape(B, S, H)
    return out


if __name__ == "__main__":
    B, S, H, NH = 2, 8, 32, 4

    key = jax.random.PRNGKey(0)
    keys = jax.random.split(key, 8)

    hidden_states = jax.random.normal(keys[0], (B, S, H), dtype=jnp.float32)

    # BERT-style additive mask: last two tokens of batch 1 are padding.
    pad = jnp.ones((B, S), dtype=jnp.float32).at[1, -2:].set(0.0)
    attention_mask = (1.0 - pad)[:, None, None, :] * -10000.0   # [B,1,1,S]

    # Deterministic nn.Linear-shaped params (stored pre-transposed: [in, out]).
    def init_linear(kw, kb):
        bound = 1.0 / math.sqrt(H)
        w = jax.random.uniform(kw, (H, H), jnp.float32, -bound, bound)
        b = jax.random.uniform(kb, (1, H), jnp.float32, -bound, bound)
        return w, b

    wq, bq = init_linear(keys[1], keys[2])
    wk, bk = init_linear(keys[3], keys[4])
    wv, bv = init_linear(keys[5], keys[6])
    params = (wq, bq, wk, bk, wv, bv)

    ref = reference_attention(hidden_states, attention_mask, params,
                              num_heads=NH)

    # f32 path (exact semantics; approx reciprocal => slightly loosened tol).
    out = bert_self_attention(hidden_states, attention_mask, params,
                              num_heads=NH)
    out = jax.block_until_ready(out)
    assert out.shape == (B, S, H)
    assert jnp.allclose(out, ref, atol=2e-3, rtol=2e-3), "f32 mismatch vs ref"

    # bf16 MXU path (f32 accumulation + f32 softmax) — loose sanity check.
    out_bf16 = bert_self_attention(hidden_states, attention_mask, params,
                                   num_heads=NH, compute_dtype=jnp.bfloat16)
    out_bf16 = jax.block_until_ready(out_bf16).astype(jnp.float32)
    assert jnp.allclose(out_bf16, ref, atol=1e-1, rtol=1e-1), "bf16 mismatch"

    # NOTE: self.dropout is defined in the PyTorch module but never applied in
    # its forward/attention path, so it is intentionally omitted here.
    print("KERNEL_OK")
</pallas_src>

<mosaic_0001>
module attributes {stable_mosaic.version = 11 : i64} {
  func.func @_bert_attn_group_kernel(%arg0: i32, %arg1: i32, %arg2: memref<1x8x32xf32, #tpu.memory_space<vmem>>, %arg3: memref<1x32x96xf32, #tpu.memory_space<vmem>>, %arg4: memref<1x1x96xf32, #tpu.memory_space<vmem>>, %arg5: memref<1x1x8xf32, #tpu.memory_space<vmem>>, %arg6: memref<1x8x32xf32, #tpu.memory_space<vmem>>) attributes {dimension_semantics = [#tpu.dimension_semantics<parallel>, #tpu.dimension_semantics<parallel>], iteration_bounds = array<i64: 2, 1>, scalar_prefetch = 0 : i64, scratch_operands = 0 : i64, tpu.core_type = #tpu.core_type<tc>, window_params = [{transform_indices = @transform_0, window_bounds = array<i64: 1, 8, 32>}, {transform_indices = @transform_1, window_bounds = array<i64: 1, 32, 96>}, {transform_indices = @transform_2, window_bounds = array<i64: 1, 1, 96>}, {transform_indices = @transform_3, window_bounds = array<i64: 1, 1, 8>}, {transform_indices = @transform_4, window_bounds = array<i64: 1, 8, 32>}]} {
    %c0 = arith.constant 0 : index
    %c0_0 = arith.constant 0 : index
    %c0_1 = arith.constant 0 : index
    %0 = vector.load %arg2[%c0, %c0_0, %c0_1] : memref<1x8x32xf32, #tpu.memory_space<vmem>>, vector<1x8x32xf32>
    %1 = vector.shape_cast %0 : vector<1x8x32xf32> to vector<8x32xf32>
    %c0_2 = arith.constant 0 : index
    %c0_3 = arith.constant 0 : index
    %c0_4 = arith.constant 0 : index
    %2 = vector.load %arg3[%c0_2, %c0_3, %c0_4] : memref<1x32x96xf32, #tpu.memory_space<vmem>>, vector<1x32x96xf32>
    %3 = vector.shape_cast %2 : vector<1x32x96xf32> to vector<32x96xf32>
    %c0_5 = arith.constant 0 : index
    %c0_6 = arith.constant 0 : index
    %c0_7 = arith.constant 0 : index
    %4 = vector.load %arg4[%c0_5, %c0_6, %c0_7] : memref<1x1x96xf32, #tpu.memory_space<vmem>>, vector<1x1x96xf32>
    %5 = vector.shape_cast %4 : vector<1x1x96xf32> to vector<1x96xf32>
    %c0_8 = arith.constant 0 : index
    %c0_9 = arith.constant 0 : index
    %c0_10 = arith.constant 0 : index
    %6 = vector.load %arg5[%c0_8, %c0_9, %c0_10] : memref<1x1x8xf32, #tpu.memory_space<vmem>>, vector<1x1x8xf32>
    %7 = vector.shape_cast %6 : vector<1x1x8xf32> to vector<1x8xf32>
    %cst = arith.constant dense<0.000000e+00> : vector<8x96xf32>
    %8 = tpu.matmul %1, %3, %cst {dimension_numbers = #tpu.dot_dimension_numbers<[1], [0], [0], [1], [0, 0, 1, 1], [], []>} : vector<8x32xf32>, vector<32x96xf32>, vector<8x96xf32> -> vector<8x96xf32>
    %9 = vector.broadcast %5 : vector<1x96xf32> to vector<8x96xf32>
    %10 = arith.addf %8, %9 : vector<8x96xf32>
    %11 = vector.extract_strided_slice %10 {offsets = [0, 0], sizes = [8, 8], strides = [1, 1]} : vector<8x96xf32> to vector<8x8xf32>
    %12 = vector.extract_strided_slice %10 {offsets = [0, 32], sizes = [8, 8], strides = [1, 1]} : vector<8x96xf32> to vector<8x8xf32>
    %13 = vector.extract_strided_slice %10 {offsets = [0, 64], sizes = [8, 8], strides = [1, 1]} : vector<8x96xf32> to vector<8x8xf32>
    %cst_11 = arith.constant dense<0.000000e+00> : vector<8x8xf32>
    %14 = tpu.matmul %11, %12, %cst_11 {dimension_numbers = #tpu.dot_dimension_numbers<[1], [1], [0], [0], [0, 0, 1, 0], [], []>} : vector<8x8xf32>, vector<8x8xf32>, vector<8x8xf32> -> vector<8x8xf32>
    %15 = vector.broadcast %7 : vector<1x8xf32> to vector<8x8xf32>
    %16 = arith.addf %14, %15 : vector<8x8xf32>
    %cst_12 = arith.constant dense<0xFF800000> : vector<8xf32>
    %17 = vector.multi_reduction <maximumf>, %16, %cst_12 [1] : vector<8x8xf32> to vector<8xf32>
    %18 = vector.shape_cast %17 : vector<8xf32> to vector<8x1xf32>
    %19 = vector.broadcast %18 : vector<8x1xf32> to vector<8x8xf32>
    %20 = arith.subf %16, %19 : vector<8x8xf32>
    %21 = math.exp %20 : vector<8x8xf32>
    %cst_13 = arith.constant dense<0.000000e+00> : vector<8xf32>
    %22 = vector.multi_reduction <add>, %21, %cst_13 [1] : vector<8x8xf32> to vector<8xf32>
    %23 = vector.shape_cast %22 : vector<8xf32> to vector<8x1xf32>
    %cst_14 = arith.constant dense<0.000000e+00> : vector<8x8xf32>
    %24 = tpu.matmul %21, %13, %cst_14 {dimension_numbers = #tpu.dot_dimension_numbers<[1], [0], [0], [1], [0, 0, 1, 1], [], []>} : vector<8x8xf32>, vector<8x8xf32>, vector<8x8xf32> -> vector<8x8xf32>
    %25 = tpu.reciprocal %23 {approx = true} : vector<8x1xf32> -> vector<8x1xf32>
    %26 = vector.broadcast %25 : vector<8x1xf32> to vector<8x8xf32>
    %27 = arith.mulf %24, %26 : vector<8x8xf32>
    %28 = vector.extract_strided_slice %10 {offsets = [0, 8], sizes = [8, 8], strides = [1, 1]} : vector<8x96xf32> to vector<8x8xf32>
    %29 = vector.extract_strided_slice %10 {offsets = [0, 40], sizes = [8, 8], strides = [1, 1]} : vector<8x96xf32> to vector<8x8xf32>
    %30 = vector.extract_strided_slice %10 {offsets = [0, 72], sizes = [8, 8], strides = [1, 1]} : vector<8x96xf32> to vector<8x8xf32>
    %cst_15 = arith.constant dense<0.000000e+00> : vector<8x8xf32>
    %31 = tpu.matmul %28, %29, %cst_15 {dimension_numbers = #tpu.dot_dimension_numbers<[1], [1], [0], [0], [0, 0, 1, 0], [], []>} : vector<8x8xf32>, vector<8x8xf32>, vector<8x8xf32> -> vector<8x8xf32>
    %32 = vector.broadcast %7 : vector<1x8xf32> to vector<8x8xf32>
    %33 = arith.addf %31, %32 : vector<8x8xf32>
    %cst_16 = arith.constant dense<0xFF800000> : vector<8xf32>
    %34 = vector.multi_reduction <maximumf>, %33, %cst_16 [1] : vector<8x8xf32> to vector<8xf32>
    %35 = vector.shape_cast %34 : vector<8xf32> to vector<8x1xf32>
    %36 = vector.broadcast %35 : vector<8x1xf32> to vector<8x8xf32>
    %37 = arith.subf %33, %36 : vector<8x8xf32>
    %38 = math.exp %37 : vector<8x8xf32>
    %cst_17 = arith.constant dense<0.000000e+00> : vector<8xf32>
    %39 = vector.multi_reduction <add>, %38, %cst_17 [1] : vector<8x8xf32> to vector<8xf32>
    %40 = vector.shape_cast %39 : vector<8xf32> to vector<8x1xf32>
    %cst_18 = arith.constant dense<0.000000e+00> : vector<8x8xf32>
    %41 = tpu.matmul %38, %30, %cst_18 {dimension_numbers = #tpu.dot_dimension_numbers<[1], [0], [0], [1], [0, 0, 1, 1], [], []>} : vector<8x8xf32>, vector<8x8xf32>, vector<8x8xf32> -> vector<8x8xf32>
    %42 = tpu.reciprocal %40 {approx = true} : vector<8x1xf32> -> vector<8x1xf32>
    %43 = vector.broadcast %42 : vector<8x1xf32> to vector<8x8xf32>
    %44 = arith.mulf %41, %43 : vector<8x8xf32>
    %45 = vector.extract_strided_slice %10 {offsets = [0, 16], sizes = [8, 8], strides = [1, 1]} : vector<8x96xf32> to vector<8x8xf32>
    %46 = vector.extract_strided_slice %10 {offsets = [0, 48], sizes = [8, 8], strides = [1, 1]} : vector<8x96xf32> to vector<8x8xf32>
    %47 = vector.extract_strided_slice %10 {offsets = [0, 80], sizes = [8, 8], strides = [1, 1]} : vector<8x96xf32> to vector<8x8xf32>
    %cst_19 = arith.constant dense<0.000000e+00> : vector<8x8xf32>
    %48 = tpu.matmul %45, %46, %cst_19 {dimension_numbers = #tpu.dot_dimension_numbers<[1], [1], [0], [0], [0, 0, 1, 0], [], []>} : vector<8x8xf32>, vector<8x8xf32>, vector<8x8xf32> -> vector<8x8xf32>
    %49 = vector.broadcast %7 : vector<1x8xf32> to vector<8x8xf32>
    %50 = arith.addf %48, %49 : vector<8x8xf32>
    %cst_20 = arith.constant dense<0xFF800000> : vector<8xf32>
    %51 = vector.multi_reduction <maximumf>, %50, %cst_20 [1] : vector<8x8xf32> to vector<8xf32>
    %52 = vector.shape_cast %51 : vector<8xf32> to vector<8x1xf32>
    %53 = vector.broadcast %52 : vector<8x1xf32> to vector<8x8xf32>
    %54 = arith.subf %50, %53 : vector<8x8xf32>
    %55 = math.exp %54 : vector<8x8xf32>
    %cst_21 = arith.constant dense<0.000000e+00> : vector<8xf32>
    %56 = vector.multi_reduction <add>, %55, %cst_21 [1] : vector<8x8xf32> to vector<8xf32>
    %57 = vector.shape_cast %56 : vector<8xf32> to vector<8x1xf32>
    %cst_22 = arith.constant dense<0.000000e+00> : vector<8x8xf32>
    %58 = tpu.matmul %55, %47, %cst_22 {dimension_numbers = #tpu.dot_dimension_numbers<[1], [0], [0], [1], [0, 0, 1, 1], [], []>} : vector<8x8xf32>, vector<8x8xf32>, vector<8x8xf32> -> vector<8x8xf32>
    %59 = tpu.reciprocal %57 {approx = true} : vector<8x1xf32> -> vector<8x1xf32>
    %60 = vector.broadcast %59 : vector<8x1xf32> to vector<8x8xf32>
    %61 = arith.mulf %58, %60 : vector<8x8xf32>
    %62 = vector.extract_strided_slice %10 {offsets = [0, 24], sizes = [8, 8], strides = [1, 1]} : vector<8x96xf32> to vector<8x8xf32>
    %63 = vector.extract_strided_slice %10 {offsets = [0, 56], sizes = [8, 8], strides = [1, 1]} : vector<8x96xf32> to vector<8x8xf32>
    %64 = vector.extract_strided_slice %10 {offsets = [0, 88], sizes = [8, 8], strides = [1, 1]} : vector<8x96xf32> to vector<8x8xf32>
    %cst_23 = arith.constant dense<0.000000e+00> : vector<8x8xf32>
    %65 = tpu.matmul %62, %63, %cst_23 {dimension_numbers = #tpu.dot_dimension_numbers<[1], [1], [0], [0], [0, 0, 1, 0], [], []>} : vector<8x8xf32>, vector<8x8xf32>, vector<8x8xf32> -> vector<8x8xf32>
    %66 = vector.broadcast %7 : vector<1x8xf32> to vector<8x8xf32>
    %67 = arith.addf %65, %66 : vector<8x8xf32>
    %cst_24 = arith.constant dense<0xFF800000> : vector<8xf32>
    %68 = vector.multi_reduction <maximumf>, %67, %cst_24 [1] : vector<8x8xf32> to vector<8xf32>
    %69 = vector.shape_cast %68 : vector<8xf32> to vector<8x1xf32>
    %70 = vector.broadcast %69 : vector<8x1xf32> to vector<8x8xf32>
    %71 = arith.subf %67, %70 : vector<8x8xf32>
    %72 = math.exp %71 : vector<8x8xf32>
    %cst_25 = arith.constant dense<0.000000e+00> : vector<8xf32>
    %73 = vector.multi_reduction <add>, %72, %cst_25 [1] : vector<8x8xf32> to vector<8xf32>
    %74 = vector.shape_cast %73 : vector<8xf32> to vector<8x1xf32>
    %cst_26 = arith.constant dense<0.000000e+00> : vector<8x8xf32>
    %75 = tpu.matmul %72, %64, %cst_26 {dimension_numbers = #tpu.dot_dimension_numbers<[1], [0], [0], [1], [0, 0, 1, 1], [], []>} : vector<8x8xf32>, vector<8x8xf32>, vector<8x8xf32> -> vector<8x8xf32>
    %76 = tpu.reciprocal %74 {approx = true} : vector<8x1xf32> -> vector<8x1xf32>
    %77 = vector.broadcast %76 : vector<8x1xf32> to vector<8x8xf32>
    %78 = arith.mulf %75, %77 : vector<8x8xf32>
    %79 = tpu.concatenate %27, %44, %61, %78 in 1 : vector<8x8xf32>, vector<8x8xf32>, vector<8x8xf32>, vector<8x8xf32> -> vector<8x32xf32>
    %c0_27 = arith.constant 0 : index
    %c0_28 = arith.constant 0 : index
    %c0_29 = arith.constant 0 : index
    %80 = vector.load %arg6[%c0_27, %c0_28, %c0_29] : memref<1x8x32xf32, #tpu.memory_space<vmem>>, vector<1x8x32xf32>
    %81 = vector.shape_cast %80 : vector<1x8x32xf32> to vector<8x32xf32>
    %82 = vector.shape_cast %79 : vector<8x32xf32> to vector<1x8x32xf32>
    tpu.vector_store %arg6[%c0_27, %c0_28, %c0_29], %82 {strides = array<i32>} : memref<1x8x32xf32, #tpu.memory_space<vmem>>, vector<1x8x32xf32>,
    return
  }
  func.func @transform_0(%arg0: i32, %arg1: i32) -> (i32, i32, i32) {
    %c0_i32 = arith.constant 0 : i32
    %c0_i32_0 = arith.constant 0 : i32
    %c0_i32_1 = arith.constant 0 : i32
    return %arg0, %c0_i32, %c0_i32_0 : i32, i32, i32
  }
  func.func @transform_1(%arg0: i32, %arg1: i32) -> (i32, i32, i32) {
    %c0_i32 = arith.constant 0 : i32
    %c0_i32_0 = arith.constant 0 : i32
    %c0_i32_1 = arith.constant 0 : i32
    return %arg1, %c0_i32, %c0_i32_0 : i32, i32, i32
  }
  func.func @transform_2(%arg0: i32, %arg1: i32) -> (i32, i32, i32) {
    %c0_i32 = arith.constant 0 : i32
    %c0_i32_0 = arith.constant 0 : i32
    %c0_i32_1 = arith.constant 0 : i32
    return %arg1, %c0_i32, %c0_i32_0 : i32, i32, i32
  }
  func.func @transform_3(%arg0: i32, %arg1: i32) -> (i32, i32, i32) {
    %c0_i32 = arith.constant 0 : i32
    %c0_i32_0 = arith.constant 0 : i32
    %c0_i32_1 = arith.constant 0 : i32
    return %arg0, %c0_i32, %c0_i32_0 : i32, i32, i32
  }
  func.func @transform_4(%arg0: i32, %arg1: i32) -> (i32, i32, i32) {
    %c0_i32 = arith.constant 0 : i32
    %c0_i32_0 = arith.constant 0 : i32
    return %arg0, %c0_i32, %arg1 : i32, i32, i32
  }
}

</mosaic_0001>

<llo_original>
// kernel: tpu_custom_call.1
$region0: #{tpu_custom_call.1}
  #allocation0 [shape = 'u32[]', space=smem, size = 0x4, offset = 0x4, fixed_abs, tag = 'smem constant byte address 0x4 - core index']
  #allocation1 [shape = 'u32[144,128]{1,0:T(1,128)}', space=vmem, size = 0x12000, scoped, tag = 'internal scratch']
  %s0 = inlined_call_operand.hbm [shape: f32[2,8,32], index: 0, kind: input, shape index: {}]
  %s1 = inlined_call_operand.hbm [shape: f32[1,32,96], index: 1, kind: input, shape index: {}]
  %s2 = inlined_call_operand.vmem [shape: f32[1,1,96], index: 2, kind: input, shape index: {}]
  %s3 = inlined_call_operand.vmem [shape: f32[2,1,8], index: 3, kind: input, shape index: {}]
  %s4 = inlined_call_operand.hbm [shape: f32[2,8,32], index: 4, kind: output, shape index: {}]
  %s5 = sld [smem:[#allocation0]]
  $region57: #{tpu_custom_call.1} parent=0
    _
  %s7 = ssub.s32 1, %s5
  %s8 = scalar_select 0, %s7, %s5
  $region1: #{tpu_custom_call.1} parent=0
    #allocation2 [shape = 'u8[8192]{0}', space=vmem, size = 0x2000, scoped, tag = 'input window, operand 0']
    #allocation3 [shape = 's32[2]{0}', space=sflag, size = 0x8, scoped, tag = 'scoped memory for tpu_custom_call.1']
    #allocation4 [shape = 's32[2]{0}', space=sflag, size = 0x8, scoped, tag = 'scoped memory for tpu_custom_call.1']
    #allocation5 [shape = 'u8[16384]{0}', space=vmem, size = 0x4000, scoped, tag = 'input window, operand 1, single buffered']
    #allocation6 [shape = 's32[1]{0}', space=sflag, size = 0x4, scoped, tag = 'scoped memory for tpu_custom_call.1']
    #allocation7 [shape = 'u8[8192]{0}', space=vmem, size = 0x2000, scoped, tag = 'output window, operand 0']
    %9 = vsyncpa [#allocation3], 0
    %s10 = scalar_lea.sflag [#allocation3], 1
    %11 = vsyncpa %s10, 0
    %12 = vsyncpa [#allocation6], 0
    %13 = vsyncpa [#allocation4], 0
    %s14 = scalar_lea.sflag [#allocation4], 1
    %15 = vsyncpa %s14, 0
    loop: start=0, step=1, limit=4
    $region2: #{tpu_custom_call.1} parent=1 // loop_pre_header
      _
    $region3: #{tpu_custom_call.1} parent=1 // loop_header
      %s17 = sphi 0, %s21
      %p18 = scmp.ge.s32.totalorder %s17, 4
      %s24 = sphi 0, %s36
      %s25 = sphi 0, %s32
      %s26 = sphi 0, %s24
      %s27 = sphi 0, %s25
      %s28 = sphi 0, %s26
      %s29 = sphi 0, %s27
      %s39 = sphi 0, %s41
      %s42 = sphi 0, %s39
      %s43 = sphi 0, %s42
      %s59 = sphi 0, %s43
      %s65 = sphi 0, %s67
      %s68 = sphi 0, %s65
      %s69 = sphi 0, %s68
      %s85 = sphi 0, %s69
      %s91 = sphi 0, %s93
      %s94 = sphi 0, %s91
      %s95 = sphi 0, %s94
      %s111 = sphi 0, %s95
      %s117 = sphi 0, %s119
      %s120 = sphi 0, %s117
      %s121 = sphi 0, %s120
      %s137 = sphi 0, %s121
      %s145 = sphi 0, %s147
      %s148 = sphi 0, %s145
      %s149 = sphi 0, %s148
      %s165 = sphi 0, %s149
    $region4: #{tpu_custom_call.1} parent=1 // loop_header_branch
      %20 = sbr.rel (%p18) target = $region8
    $region5: #{tpu_custom_call.1} parent=1 // loop_body
      %s22 = ssub.s32 %s17, 1
      %s23 = ssub.s32 %s17, 2
      %s30 = sadd.s32 1, %s25
      %p31 = scmp.ge.s32.totalorder %s30, 1
      %s32 = scalar_select %p31, 0, %s30
      %s33 = sadd.s32 1, %s24
      %s34 = scalar_select %p31, %s33, %s24
      %p35 = scmp.ge.s32.totalorder %s34, 2
      %s36 = scalar_select %p35, 0, %s34
      %s37 = ssub.s32 %s24, %s36
      %p38 = scmp.eq.s32.totalorder %s37, 0
      %s40 = sadd.s32 %s39, 1
      %s41 = scalar_select %p38, %s39, %s40
      %p44 = pneg %p38
      %p45 = scmp.eq.s32.totalorder %s17, 1
      %p46 = por %p44, %p45
      %p47 = scmp.ne.s32.totalorder %s39, %s42
      %p48 = scmp.eq.s32.totalorder %s17, 0
      %p49 = por %p47, %p48
      %p50 = scmp.ne.s32.totalorder %s39, %s42
      %p51 = scmp.eq.s32.totalorder %s22, 1
      %p52 = por %p50, %p51
      %p53 = scmp.ne.s32.totalorder %s42, %s43
      %p54 = scmp.eq.s32.totalorder %s22, 0
      %p55 = por %p53, %p54
      %p56 = scmp.ne.s32.totalorder %s42, %s43
      %p57 = scmp.eq.s32.totalorder %s23, 1
      %p58 = por %p56, %p57
      %p60 = scmp.ne.s32.totalorder %s43, %s59
      %p61 = scmp.eq.s32.totalorder %s23, 0
      %p62 = por %p60, %p61
      %s63 = ssub.s32 %s25, %s32
      %p64 = scmp.eq.s32.totalorder %s63, 0
      %s66 = sadd.s32 %s65, 1
      %s67 = scalar_select %p64, %s65, %s66
      %p70 = pneg %p64
      %p71 = scmp.eq.s32.totalorder %s17, 1
      %p72 = por %p70, %p71
      %p73 = scmp.ne.s32.totalorder %s65, %s68
      %p74 = scmp.eq.s32.totalorder %s17, 0
      %p75 = por %p73, %p74
      %p76 = scmp.ne.s32.totalorder %s65, %s68
      %p77 = scmp.eq.s32.totalorder %s22, 1
      %p78 = por %p76, %p77
      %p79 = scmp.ne.s32.totalorder %s68, %s69
      %p80 = scmp.eq.s32.totalorder %s22, 0
      %p81 = por %p79, %p80
      %p82 = scmp.ne.s32.totalorder %s68, %s69
      %p83 = scmp.eq.s32.totalorder %s23, 1
      %p84 = por %p82, %p83
      %p86 = scmp.ne.s32.totalorder %s69, %s85
      %p87 = scmp.eq.s32.totalorder %s23, 0
      %p88 = por %p86, %p87
      %s89 = ssub.s32 %s25, %s32
      %p90 = scmp.eq.s32.totalorder %s89, 0
      %s92 = sadd.s32 %s91, 1
      %s93 = scalar_select %p90, %s91, %s92
      %p96 = pneg %p90
      %p97 = scmp.eq.s32.totalorder %s17, 1
      %p98 = por %p96, %p97
      %p99 = scmp.ne.s32.totalorder %s91, %s94
      %p100 = scmp.eq.s32.totalorder %s17, 0
      %p101 = por %p99, %p100
      %p102 = scmp.ne.s32.totalorder %s91, %s94
      %p103 = scmp.eq.s32.totalorder %s22, 1
      %p104 = por %p102, %p103
      %p105 = scmp.ne.s32.totalorder %s94, %s95
      %p106 = scmp.eq.s32.totalorder %s22, 0
      %p107 = por %p105, %p106
      %p108 = scmp.ne.s32.totalorder %s94, %s95
      %p109 = scmp.eq.s32.totalorder %s23, 1
      %p110 = por %p108, %p109
      %p112 = scmp.ne.s32.totalorder %s95, %s111
      %p113 = scmp.eq.s32.totalorder %s23, 0
      %p114 = por %p112, %p113
      %s115 = ssub.s32 %s24, %s36
      %p116 = scmp.eq.s32.totalorder %s115, 0
      %s118 = sadd.s32 %s117, 1
      %s119 = scalar_select %p116, %s117, %s118
      %p122 = pneg %p116
      %p123 = scmp.eq.s32.totalorder %s17, 1
      %p124 = por %p122, %p123
      %p125 = scmp.ne.s32.totalorder %s117, %s120
      %p126 = scmp.eq.s32.totalorder %s17, 0
      %p127 = por %p125, %p126
      %p128 = scmp.ne.s32.totalorder %s117, %s120
      %p129 = scmp.eq.s32.totalorder %s22, 1
      %p130 = por %p128, %p129
      %p131 = scmp.ne.s32.totalorder %s120, %s121
      %p132 = scmp.eq.s32.totalorder %s22, 0
      %p133 = por %p131, %p132
      %p134 = scmp.ne.s32.totalorder %s120, %s121
      %p135 = scmp.eq.s32.totalorder %s23, 1
      %p136 = por %p134, %p135
      %p138 = scmp.ne.s32.totalorder %s121, %s137
      %p139 = scmp.eq.s32.totalorder %s23, 0
      %p140 = por %p138, %p139
      %s141 = ssub.s32 %s24, %s36
      %s142 = ssub.s32 %s25, %s32
      %s143 = sor.u32 %s141, %s142
      %p144 = scmp.eq.s32.totalorder %s143, 0
      %s146 = sadd.s32 %s145, 1
      %s147 = scalar_select %p144, %s145, %s146
      %p150 = pneg %p144
      %p151 = scmp.eq.s32.totalorder %s17, 1
      %p152 = por %p150, %p151
      %p153 = scmp.ne.s32.totalorder %s145, %s148
      %p154 = scmp.eq.s32.totalorder %s17, 0
      %p155 = por %p153, %p154
      %p156 = scmp.ne.s32.totalorder %s145, %s148
      %p157 = scmp.eq.s32.totalorder %s22, 1
      %p158 = por %p156, %p157
      %p159 = scmp.ne.s32.totalorder %s148, %s149
      %p160 = scmp.eq.s32.totalorder %s22, 0
      %p161 = por %p159, %p160
      %p162 = scmp.ne.s32.totalorder %s148, %s149
      %p163 = scmp.eq.s32.totalorder %s23, 1
      %p164 = por %p162, %p163
      %p166 = scmp.ne.s32.totalorder %s149, %s165
      %p167 = scmp.eq.s32.totalorder %s23, 0
      %p168 = por %p166, %p167
      %p169 = scmp.le.s32.totalorder 1, %s17
      %p170 = scmp.lt.s32.totalorder %s17, 3
      %p171 = pnand %p169, %p170
      %p172 = pneg %p171
      // Predicated region
      $region9: #{tpu_custom_call.1} parent=5 // pred_check
        _
      $region10: #{tpu_custom_call.1} parent=5 // pred_check_branch
        %174 = sbr.rel (%p171) target = $region12
      $region11: #{tpu_custom_call.1} parent=5 // pred_region
        %s175 = ssub.s32 %s17, 1
        // Predicated region
        $region13: #{tpu_custom_call.1} parent=11 // pred_check
          %p176 = pneg %p81
        $region14: #{tpu_custom_call.1} parent=11 // pred_check_branch
          %178 = sbr.rel (%p176) target = $region16
        $region15: #{tpu_custom_call.1} parent=11 // pred_region
          %s180 = ssub.s32 512, 512
          %181 = vsyncadd [#allocation6], %s180
          %s182 = smul.addr %s27, 4
          %s183 = smul.addr %s182, 128
          %s184 = scalar_lea.hbm %s1, %s183
          %s185 = sshll.u32 [#allocation5], 4
          %s186 = int_to_ptr.vmem [resolvable:$true] %s185
          %191 = dma.hbm_to_vmem [thread:$0]  %s184, 512, %s186, [#allocation6], 128, 128, 8
        $region16: #{tpu_custom_call.1} parent=11 // pred_fallthru
          _
        // Predicated region
        $region17: #{tpu_custom_call.1} parent=11 // pred_check
          %p192 = pneg %p107
        $region18: #{tpu_custom_call.1} parent=11 // pred_check_branch
          %194 = sbr.rel (%p192) target = $region20
        $region19: #{tpu_custom_call.1} parent=11 // pred_region
          %p195 = scmp.lt.s32.totalorder %s27, 0
          %s196 = scalar_select %p195, %s27, 0
          %s197 = scalar_lea.vmem %s2, %s196
        $region20: #{tpu_custom_call.1} parent=11 // pred_fallthru
          _
      $region12: #{tpu_custom_call.1} parent=5 // pred_fallthru
        _
      %p198 = scmp.lt.s32.totalorder %s17, 2
      // Predicated region
      $region21: #{tpu_custom_call.1} parent=5 // pred_check
        %p199 = pneg %p198
      $region22: #{tpu_custom_call.1} parent=5 // pred_check_branch
        %201 = sbr.rel (%p199) target = $region24
      $region23: #{tpu_custom_call.1} parent=5 // pred_region
        // Predicated region
        $region25: #{tpu_custom_call.1} parent=23 // pred_check
          %p202 = pneg %p49
        $region26: #{tpu_custom_call.1} parent=23 // pred_check_branch
          %204 = sbr.rel (%p202) target = $region28
        $region27: #{tpu_custom_call.1} parent=23 // pred_region
          %s205 = sand.u32 %s39, 1
          %s206 = scalar_lea.sflag [#allocation3], %s205
          %s207 = sand.u32 %s39, 1
          %s208 = smul.addr %s207, 8
          %s209 = scalar_lea.vmem [#allocation2], %s208
          %s211 = ssub.s32 128, 128
          %212 = vsyncadd %s206, %s211
          %s213 = smul.addr %s24, 128
          %s214 = scalar_lea.hbm %s0, %s213
          %s216 = sshll.u32 %s209, 4
          %s217 = int_to_ptr.vmem [resolvable:$true] %s216
          %219 = dma.hbm_to_vmem [thread:$0]  %s214, 128, %s217, %s206
        $region28: #{tpu_custom_call.1} parent=23 // pred_fallthru
          _
        // Predicated region
        $region29: #{tpu_custom_call.1} parent=23 // pred_check
          %p220 = pneg %p127
        $region30: #{tpu_custom_call.1} parent=23 // pred_check_branch
          %222 = sbr.rel (%p220) target = $region32
        $region31: #{tpu_custom_call.1} parent=23 // pred_region
          %p223 = scmp.lt.s32.totalorder %s24, 1
          %s224 = scalar_select %p223, %s24, 1
          %s225 = scalar_lea.vmem %s3, %s224
        $region32: #{tpu_custom_call.1} parent=23 // pred_fallthru
          _
      $region24: #{tpu_custom_call.1} parent=5 // pred_fallthru
        _
      %p226 = scmp.le.s32.totalorder 1, %s17
      %p227 = scmp.lt.s32.totalorder %s17, 3
      %p228 = pnand %p226, %p227
      %p229 = pneg %p228
      // Predicated region
      $region33: #{tpu_custom_call.1} parent=5 // pred_check
        _
      $region34: #{tpu_custom_call.1} parent=5 // pred_check_branch
        %231 = sbr.rel (%p228) target = $region36
      $region35: #{tpu_custom_call.1} parent=5 // pred_region
        %s232 = ssub.s32 %s17, 1
        %s233 = sand.u32 %s42, 1
        %s234 = scalar_lea.sflag [#allocation3], %s233
        %s235 = sand.u32 %s42, 1
        %s236 = smul.addr %s235, 8
        %s237 = scalar_lea.vmem [#allocation2], %s236
        // Predicated region
        $region37: #{tpu_custom_call.1} parent=35 // pred_check
          %p238 = pneg %p55
        $region38: #{tpu_custom_call.1} parent=35 // pred_check_branch
          %240 = sbr.rel (%p238) target = $region40
        $region39: #{tpu_custom_call.1} parent=35 // pred_region
          %241 = dma.done %s234, 128
        $region40: #{tpu_custom_call.1} parent=35 // pred_fallthru
          _
        // Predicated region
        $region41: #{tpu_custom_call.1} parent=35 // pred_check
          %p242 = pneg %p81
        $region42: #{tpu_custom_call.1} parent=35 // pred_check_branch
          %244 = sbr.rel (%p242) target = $region44
        $region43: #{tpu_custom_call.1} parent=35 // pred_region
          %245 = dma.done [#allocation6], 512
        $region44: #{tpu_custom_call.1} parent=35 // pred_fallthru
          _
        %s246 = sand.u32 %s42, 1
        %s247 = scalar_lea.sflag [#allocation3], %s246
        %s248 = sand.u32 %s42, 1
        %s249 = smul.addr %s248, 8
        %s250 = scalar_lea.vmem [#allocation2], %s249
        %p251 = pneg %p55
        %p252 = pneg %p52
        %p253 = pneg %p81
        %p254 = pneg %p78
        %p255 = scmp.lt.s32.totalorder %s27, 0
        %s256 = scalar_select %p255, %s27, 0
        %s257 = scalar_lea.vmem %s2, %s256
        %p258 = pneg %p107
        %p259 = pneg %p104
        %p260 = scmp.lt.s32.totalorder %s26, 1
        %s261 = scalar_select %p260, %s26, 1
        %s262 = scalar_lea.vmem %s3, %s261
        %p263 = pneg %p133
        %p264 = pneg %p130
        %p265 = pneg %p161
        %p266 = pneg %p158
        %s267 = sand.u32 %s148, 1
        %s268 = scalar_lea.sflag [#allocation4], %s267
        %s269 = sand.u32 %s148, 1
        %s270 = smul.addr %s269, 8
        %s271 = scalar_lea.vmem [#allocation7], %s270
        %p272 = scmp.lt.s32.totalorder %s27, 0
        %s273 = scalar_select %p272, %s27, 0
        %s274 = scalar_lea.vmem %s2, %s273
        %p275 = scmp.lt.s32.totalorder %s26, 1
        %s276 = scalar_select %p275, %s26, 1
        %s277 = scalar_lea.vmem %s3, %s276
        %v278 = vld [vmem:[%s237] sm:$0xff]
        %v279 = vld [vmem:[#allocation5] sm:$0xff]
        %v280 = vld [vmem:[#allocation5 + $0x8] sm:$0xff]
        %v281 = vld [vmem:[#allocation5 + $0x10] sm:$0xff]
        %v282 = vld [vmem:[#allocation5 + $0x18] sm:$0xff]
        %v283 = vld [vmem:[%s274] sm:$0x1]
        %v284 = vld [vmem:[%s277] sm:$0x1]
        %v286 = vlaneseq
        %v287 = vshrl.u32 %v286, 7
        %v288 = vsub.s32 0, %v287
        %v289 = vrot.slane %v283, %v288
        %vm291 = vcmask 261120
        %v293 = vsel %vm291, %v278, 0
        %295 = vmatprep.subr.mxu0 0.0
        %296 = vmatpush1.msra.mxu0 %v279
        %297 = vmatprep.subr.mxu0 0.0
        %298 = vmatpush1.msra.mxu0 %v280
        %299 = vmatprep.subr.mxu0 0.0
        %300 = vmatpush1.msra.mxu0 %v281
        %301 = vmatprep.subr.mxu0 0.0
        %302 = vmatpush1.msra.mxu0 %v282
        %303 = vmatprep.subr.mxu0 0.0
        %304 = vmatpush1.msra.mxu0 0.0
        %305 = vmatprep.subr.mxu0 0.0
        %306 = vmatpush1.msra.mxu0 0.0
        %307 = vmatprep.subr.mxu0 0.0
        %308 = vmatpush1.msra.mxu0 0.0
        %309 = vmatprep.subr.mxu0 0.0
        %310 = vmatpush1.msra.mxu0 0.0
        %311 = vmatprep.subr.mxu0 0.0
        %312 = vmatpush1.msra.mxu0 0.0
        %313 = vmatprep.subr.mxu0 0.0
        %314 = vmatpush1.msra.mxu0 0.0
        %315 = vmatprep.subr.mxu0 0.0
        %316 = vmatpush1.msra.mxu0 0.0
        %317 = vmatprep.subr.mxu0 0.0
        %318 = vmatpush1.msra.mxu0 0.0
        %319 = vmatprep.subr.mxu0 0.0
        %320 = vmatpush1.msra.mxu0 0.0
        %321 = vmatprep.subr.mxu0 0.0
        %322 = vmatpush1.msra.mxu0 0.0
        %323 = vmatprep.subr.mxu0 0.0
        %324 = vmatpush1.msra.mxu0 0.0
        %325 = vmatprep.subr.mxu0 0.0
        %326 = vmatpush1.msra.mxu0 0.0
        %327 = vmatprep.subr.mxu0 0.0
        %328 = vmatpush1.msra.mxu0 0.0
        %329 = vmatprep.subr.mxu0 0.0
        %330 = vmatpush1.msra.mxu0 0.0
        %331 = vmatprep.subr.mxu0 0.0
        %332 = vmatpush1.msra.mxu0 0.0
        %333 = vmatprep.subr.mxu0 0.0
        %334 = vmatpush1.msra.mxu0 0.0
        %335 = vmatprep.subr.mxu0 0.0
        %336 = vmatpush1.msra.mxu0 0.0
        %337 = vmatprep.subr.mxu0 0.0
        %338 = vmatpush1.msra.mxu0 0.0
        %339 = vmatprep.subr.mxu0 0.0
        %340 = vmatpush1.msra.mxu0 0.0
        %341 = vmatprep.subr.mxu0 0.0
        %342 = vmatpush1.msra.mxu0 0.0
        %343 = vmatprep.subr.mxu0 0.0
        %344 = vmatpush1.msra.mxu0 0.0
        %345 = vmatprep.subr.mxu0 0.0
        %346 = vmatpush1.msra.mxu0 0.0
        %347 = vmatprep.subr.mxu0 0.0
        %348 = vmatpush1.msra.mxu0 0.0
        %349 = vmatprep.subr.mxu0 0.0
        %350 = vmatpush1.msra.mxu0 0.0
        %351 = vmatprep.subr.mxu0 0.0
        %352 = vmatpush1.msra.mxu0 0.0
        %353 = vmatprep.subr.mxu0 0.0
        %354 = vmatpush1.msra.mxu0 0.0
        %355 = vmatprep.subr.mxu0 0.0
        %356 = vmatpush1.msra.mxu0 0.0
        %357 = vmatprep.subr.mxu0 0.0
        %358 = vmatpush1.msra.mxu0 0.0
        %359 = vmatprep.mubr.f32.mxu0 0.0
        %360 = vmatmul.mubr.f32.gmra.mrb[0].mxu0 %v293
        %v361 = vpop.f32.mrb[0].mxu0
        %v362 = vadd.f32 %v289, %v361
        %v363 = vpop.f32.mrb[0].mxu0
        %364 = vdwg.mxu0
        %v366 = vlaneseq
        %v367 = vshrl.u32 %v366, 7
        %v368 = vsub.s32 0, %v367
        %v369 = vrot.slane %v284, %v368
        %372 = vrot.lane.b32.xlu0 %v362, 96
        %v373 = vpop.permute.xlu0 %372
        %vm374 = vcmask 64512
        %v375 = vsel %vm374, %v362, 0
        %v377 = vsel %vm374, %v373, 0
        %379 = vmatprep.subr.mxu0 0.0
        %380 = vmatpush1.xpose.msra.mxu0 %v377
        %381 = vmatprep.subr.mxu0 0.0
        %382 = vmatpush1.xpose.msra.mxu0 0.0
        %383 = vmatprep.subr.mxu0 0.0
        %384 = vmatpush1.xpose.msra.mxu0 0.0
        %385 = vmatprep.subr.mxu0 0.0
        %386 = vmatpush1.xpose.msra.mxu0 0.0
        %387 = vmatprep.subr.mxu0 0.0
        %388 = vmatpush1.xpose.msra.mxu0 0.0
        %389 = vmatprep.subr.mxu0 0.0
        %390 = vmatpush1.xpose.msra.mxu0 0.0
        %391 = vmatprep.subr.mxu0 0.0
        %392 = vmatpush1.xpose.msra.mxu0 0.0
        %393 = vmatprep.subr.mxu0 0.0
        %394 = vmatpush1.xpose.msra.mxu0 0.0
        %395 = vmatprep.subr.mxu0 0.0
        %396 = vmatpush1.xpose.msra.mxu0 0.0
        %397 = vmatprep.subr.mxu0 0.0
        %398 = vmatpush1.xpose.msra.mxu0 0.0
        %399 = vmatprep.subr.mxu0 0.0
        %400 = vmatpush1.xpose.msra.mxu0 0.0
        %401 = vmatprep.subr.mxu0 0.0
        %402 = vmatpush1.xpose.msra.mxu0 0.0
        %403 = vmatprep.subr.mxu0 0.0
        %404 = vmatpush1.xpose.msra.mxu0 0.0
        %405 = vmatprep.subr.mxu0 0.0
        %406 = vmatpush1.xpose.msra.mxu0 0.0
        %407 = vmatprep.subr.mxu0 0.0
        %408 = vmatpush1.xpose.msra.mxu0 0.0
        %409 = vmatprep.subr.mxu0 0.0
        %410 = vmatpush1.xpose.msra.mxu0 0.0
        %411 = vmatprep.subr.mxu0 0.0
        %412 = vmatpush1.xpose.msra.mxu0 0.0
        %413 = vmatprep.subr.mxu0 0.0
        %414 = vmatpush1.xpose.msra.mxu0 0.0
        %415 = vmatprep.subr.mxu0 0.0
        %416 = vmatpush1.xpose.msra.mxu0 0.0
        %417 = vmatprep.subr.mxu0 0.0
        %418 = vmatpush1.xpose.msra.mxu0 0.0
        %419 = vmatprep.subr.mxu0 0.0
        %420 = vmatpush1.xpose.msra.mxu0 0.0
        %421 = vmatprep.subr.mxu0 0.0
        %422 = vmatpush1.xpose.msra.mxu0 0.0
        %423 = vmatprep.subr.mxu0 0.0
        %424 = vmatpush1.xpose.msra.mxu0 0.0
        %425 = vmatprep.subr.mxu0 0.0
        %426 = vmatpush1.xpose.msra.mxu0 0.0
        %427 = vmatprep.subr.mxu0 0.0
        %428 = vmatpush1.xpose.msra.mxu0 0.0
        %429 = vmatprep.subr.mxu0 0.0
        %430 = vmatpush1.xpose.msra.mxu0 0.0
        %431 = vmatprep.subr.mxu0 0.0
        %432 = vmatpush1.xpose.msra.mxu0 0.0
        %433 = vmatprep.subr.mxu0 0.0
        %434 = vmatpush1.xpose.msra.mxu0 0.0
        %435 = vmatprep.subr.mxu0 0.0
        %436 = vmatpush1.xpose.msra.mxu0 0.0
        %437 = vmatprep.subr.mxu0 0.0
        %438 = vmatpush1.xpose.msra.mxu0 0.0
        %439 = vmatprep.subr.mxu0 0.0
        %440 = vmatpush1.xpose.msra.mxu0 0.0
        %441 = vmatprep.subr.mxu0 0.0
        %442 = vmatpush1.xpose.msra.mxu0 0.0
        %443 = vmatprep.mubr.f32.mxu0 0.0
        %444 = vmatmul.mubr.f32.gmra.mrb[0].mxu0 %v375
        %v445 = vpop.f32.mrb[0].mxu0
        %v446 = vadd.f32 %v369, %v445
        %v447 = vpop.f32.mrb[0].mxu0
        %448 = vdwg.mxu0
        %v449 = vsel %vm374, %v446, -inf
        %450 = vmax.xlane.f32.xlu0 %v449
        %v451 = vpop.xlane.xlu0 %450
        %v452 = vsub.f32 %v446, %v451
        %v453 = vmul.f32 %v452, 1.442695
        %v454 = vpow.pop %v453
        %v455 = vsel %vm374, %v454, 0.0
        %456 = vadd.xlane.f32.xlu0 %v455
        %v457 = vpop.xlane.xlu0 %456
        %458 = vrot.lane.b32.xlu0 %v362, 64
        %v459 = vpop.permute.xlu0 %458
        %v462 = vsel %vm374, %v454, 0
        %464 = vmatprep.subr.mxu0 0.0
        %465 = vmatpush1.msra.mxu0 %v459
        %466 = vmatprep.subr.mxu0 0.0
        %467 = vmatpush1.msra.mxu0 0.0
        %468 = vmatprep.subr.mxu0 0.0
        %469 = vmatpush1.msra.mxu0 0.0
        %470 = vmatprep.subr.mxu0 0.0
        %471 = vmatpush1.msra.mxu0 0.0
        %472 = vmatprep.subr.mxu0 0.0
        %473 = vmatpush1.msra.mxu0 0.0
        %474 = vmatprep.subr.mxu0 0.0
        %475 = vmatpush1.msra.mxu0 0.0
        %476 = vmatprep.subr.mxu0 0.0
        %477 = vmatpush1.msra.mxu0 0.0
        %478 = vmatprep.subr.mxu0 0.0
        %479 = vmatpush1.msra.mxu0 0.0
        %480 = vmatprep.subr.mxu0 0.0
        %481 = vmatpush1.msra.mxu0 0.0
        %482 = vmatprep.subr.mxu0 0.0
        %483 = vmatpush1.msra.mxu0 0.0
        %484 = vmatprep.subr.mxu0 0.0
        %485 = vmatpush1.msra.mxu0 0.0
        %486 = vmatprep.subr.mxu0 0.0
        %487 = vmatpush1.msra.mxu0 0.0
        %488 = vmatprep.subr.mxu0 0.0
        %489 = vmatpush1.msra.mxu0 0.0
        %490 = vmatprep.subr.mxu0 0.0
        %491 = vmatpush1.msra.mxu0 0.0
        %492 = vmatprep.subr.mxu0 0.0
        %493 = vmatpush1.msra.mxu0 0.0
        %494 = vmatprep.subr.mxu0 0.0
        %495 = vmatpush1.msra.mxu0 0.0
        %496 = vmatprep.subr.mxu0 0.0
        %497 = vmatpush1.msra.mxu0 0.0
        %498 = vmatprep.subr.mxu0 0.0
        %499 = vmatpush1.msra.mxu0 0.0
        %500 = vmatprep.subr.mxu0 0.0
        %501 = vmatpush1.msra.mxu0 0.0
        %502 = vmatprep.subr.mxu0 0.0
        %503 = vmatpush1.msra.mxu0 0.0
        %504 = vmatprep.subr.mxu0 0.0
        %505 = vmatpush1.msra.mxu0 0.0
        %506 = vmatprep.subr.mxu0 0.0
        %507 = vmatpush1.msra.mxu0 0.0
        %508 = vmatprep.subr.mxu0 0.0
        %509 = vmatpush1.msra.mxu0 0.0
        %510 = vmatprep.subr.mxu0 0.0
        %511 = vmatpush1.msra.mxu0 0.0
        %512 = vmatprep.subr.mxu0 0.0
        %513 = vmatpush1.msra.mxu0 0.0
        %514 = vmatprep.subr.mxu0 0.0
        %515 = vmatpush1.msra.mxu0 0.0
        %516 = vmatprep.subr.mxu0 0.0
        %517 = vmatpush1.msra.mxu0 0.0
        %518 = vmatprep.subr.mxu0 0.0
        %519 = vmatpush1.msra.mxu0 0.0
        %520 = vmatprep.subr.mxu0 0.0
        %521 = vmatpush1.msra.mxu0 0.0
        %522 = vmatprep.subr.mxu0 0.0
        %523 = vmatpush1.msra.mxu0 0.0
        %524 = vmatprep.subr.mxu0 0.0
        %525 = vmatpush1.msra.mxu0 0.0
        %526 = vmatprep.subr.mxu0 0.0
        %527 = vmatpush1.msra.mxu0 0.0
        %528 = vmatprep.mubr.f32.mxu0 0.0
        %529 = vmatmul.mubr.f32.gmra.mrb[0].mxu0 %v462
        %v530 = vpop.f32.mrb[0].mxu0
        %v531 = vadd.f32 0.0, %v530
        %v532 = vpop.f32.mrb[0].mxu0
        %533 = vdwg.mxu0
        %v534 = vrcp.pop %v457
        %v535 = vmul.f32 %v531, %v534
        %536 = vrot.lane.b32.xlu0 %v362, 120
        %v537 = vpop.permute.xlu0 %536
        %538 = vrot.lane.b32.xlu0 %v362, 88
        %v539 = vpop.permute.xlu0 %538
        %v540 = vsel %vm374, %v537, 0
        %v542 = vsel %vm374, %v539, 0
        %544 = vmatprep.subr.mxu0 0.0
        %545 = vmatpush1.xpose.msra.mxu0 %v542
        %546 = vmatprep.subr.mxu0 0.0
        %547 = vmatpush1.xpose.msra.mxu0 0.0
        %548 = vmatprep.subr.mxu0 0.0
        %549 = vmatpush1.xpose.msra.mxu0 0.0
        %550 = vmatprep.subr.mxu0 0.0
        %551 = vmatpush1.xpose.msra.mxu0 0.0
        %552 = vmatprep.subr.mxu0 0.0
        %553 = vmatpush1.xpose.msra.mxu0 0.0
        %554 = vmatprep.subr.mxu0 0.0
        %555 = vmatpush1.xpose.msra.mxu0 0.0
        %556 = vmatprep.subr.mxu0 0.0
        %557 = vmatpush1.xpose.msra.mxu0 0.0
        %558 = vmatprep.subr.mxu0 0.0
        %559 = vmatpush1.xpose.msra.mxu0 0.0
        %560 = vmatprep.subr.mxu0 0.0
        %561 = vmatpush1.xpose.msra.mxu0 0.0
        %562 = vmatprep.subr.mxu0 0.0
        %563 = vmatpush1.xpose.msra.mxu0 0.0
        %564 = vmatprep.subr.mxu0 0.0
        %565 = vmatpush1.xpose.msra.mxu0 0.0
        %566 = vmatprep.subr.mxu0 0.0
        %567 = vmatpush1.xpose.msra.mxu0 0.0
        %568 = vmatprep.subr.mxu0 0.0
        %569 = vmatpush1.xpose.msra.mxu0 0.0
        %570 = vmatprep.subr.mxu0 0.0
        %571 = vmatpush1.xpose.msra.mxu0 0.0
        %572 = vmatprep.subr.mxu0 0.0
        %573 = vmatpush1.xpose.msra.mxu0 0.0
        %574 = vmatprep.subr.mxu0 0.0
        %575 = vmatpush1.xpose.msra.mxu0 0.0
        %576 = vmatprep.subr.mxu0 0.0
        %577 = vmatpush1.xpose.msra.mxu0 0.0
        %578 = vmatprep.subr.mxu0 0.0
        %579 = vmatpush1.xpose.msra.mxu0 0.0
        %580 = vmatprep.subr.mxu0 0.0
        %581 = vmatpush1.xpose.msra.mxu0 0.0
        %582 = vmatprep.subr.mxu0 0.0
        %583 = vmatpush1.xpose.msra.mxu0 0.0
        %584 = vmatprep.subr.mxu0 0.0
        %585 = vmatpush1.xpose.msra.mxu0 0.0
        %586 = vmatprep.subr.mxu0 0.0
        %587 = vmatpush1.xpose.msra.mxu0 0.0
        %588 = vmatprep.subr.mxu0 0.0
        %589 = vmatpush1.xpose.msra.mxu0 0.0
        %590 = vmatprep.subr.mxu0 0.0
        %591 = vmatpush1.xpose.msra.mxu0 0.0
        %592 = vmatprep.subr.mxu0 0.0
        %593 = vmatpush1.xpose.msra.mxu0 0.0
        %594 = vmatprep.subr.mxu0 0.0
        %595 = vmatpush1.xpose.msra.mxu0 0.0
        %596 = vmatprep.subr.mxu0 0.0
        %597 = vmatpush1.xpose.msra.mxu0 0.0
        %598 = vmatprep.subr.mxu0 0.0
        %599 = vmatpush1.xpose.msra.mxu0 0.0
        %600 = vmatprep.subr.mxu0 0.0
        %601 = vmatpush1.xpose.msra.mxu0 0.0
        %602 = vmatprep.subr.mxu0 0.0
        %603 = vmatpush1.xpose.msra.mxu0 0.0
        %604 = vmatprep.subr.mxu0 0.0
        %605 = vmatpush1.xpose.msra.mxu0 0.0
        %606 = vmatprep.subr.mxu0 0.0
        %607 = vmatpush1.xpose.msra.mxu0 0.0
        %608 = vmatprep.mubr.f32.mxu0 0.0
        %609 = vmatmul.mubr.f32.gmra.mrb[0].mxu0 %v540
        %v610 = vpop.f32.mrb[0].mxu0
        %v611 = vadd.f32 %v369, %v610
        %v612 = vpop.f32.mrb[0].mxu0
        %613 = vdwg.mxu0
        %v614 = vsel %vm374, %v611, -inf
        %615 = vmax.xlane.f32.xlu0 %v614
        %v616 = vpop.xlane.xlu0 %615
        %v617 = vsub.f32 %v611, %v616
        %v618 = vmul.f32 %v617, 1.442695
        %v619 = vpow.pop %v618
        %v620 = vsel %vm374, %v619, 0.0
        %621 = vadd.xlane.f32.xlu0 %v620
        %v622 = vpop.xlane.xlu0 %621
        %623 = vrot.lane.b32.xlu0 %v362, 56
        %v624 = vpop.permute.xlu0 %623
        %v627 = vsel %vm374, %v619, 0
        %629 = vmatprep.subr.mxu0 0.0
        %630 = vmatpush1.msra.mxu0 %v624
        %631 = vmatprep.subr.mxu0 0.0
        %632 = vmatpush1.msra.mxu0 0.0
        %633 = vmatprep.subr.mxu0 0.0
        %634 = vmatpush1.msra.mxu0 0.0
        %635 = vmatprep.subr.mxu0 0.0
        %636 = vmatpush1.msra.mxu0 0.0
        %637 = vmatprep.subr.mxu0 0.0
        %638 = vmatpush1.msra.mxu0 0.0
        %639 = vmatprep.subr.mxu0 0.0
        %640 = vmatpush1.msra.mxu0 0.0
        %641 = vmatprep.subr.mxu0 0.0
        %642 = vmatpush1.msra.mxu0 0.0
        %643 = vmatprep.subr.mxu0 0.0
        %644 = vmatpush1.msra.mxu0 0.0
        %645 = vmatprep.subr.mxu0 0.0
        %646 = vmatpush1.msra.mxu0 0.0
        %647 = vmatprep.subr.mxu0 0.0
        %648 = vmatpush1.msra.mxu0 0.0
        %649 = vmatprep.subr.mxu0 0.0
        %650 = vmatpush1.msra.mxu0 0.0
        %651 = vmatprep.subr.mxu0 0.0
        %652 = vmatpush1.msra.mxu0 0.0
        %653 = vmatprep.subr.mxu0 0.0
        %654 = vmatpush1.msra.mxu0 0.0
        %655 = vmatprep.subr.mxu0 0.0
        %656 = vmatpush1.msra.mxu0 0.0
        %657 = vmatprep.subr.mxu0 0.0
        %658 = vmatpush1.msra.mxu0 0.0
        %659 = vmatprep.subr.mxu0 0.0
        %660 = vmatpush1.msra.mxu0 0.0
        %661 = vmatprep.subr.mxu0 0.0
        %662 = vmatpush1.msra.mxu0 0.0
        %663 = vmatprep.subr.mxu0 0.0
        %664 = vmatpush1.msra.mxu0 0.0
        %665 = vmatprep.subr.mxu0 0.0
        %666 = vmatpush1.msra.mxu0 0.0
        %667 = vmatprep.subr.mxu0 0.0
        %668 = vmatpush1.msra.mxu0 0.0
        %669 = vmatprep.subr.mxu0 0.0
        %670 = vmatpush1.msra.mxu0 0.0
        %671 = vmatprep.subr.mxu0 0.0
        %672 = vmatpush1.msra.mxu0 0.0
        %673 = vmatprep.subr.mxu0 0.0
        %674 = vmatpush1.msra.mxu0 0.0
        %675 = vmatprep.subr.mxu0 0.0
        %676 = vmatpush1.msra.mxu0 0.0
        %677 = vmatprep.subr.mxu0 0.0
        %678 = vmatpush1.msra.mxu0 0.0
        %679 = vmatprep.subr.mxu0 0.0
        %680 = vmatpush1.msra.mxu0 0.0
        %681 = vmatprep.subr.mxu0 0.0
        %682 = vmatpush1.msra.mxu0 0.0
        %683 = vmatprep.subr.mxu0 0.0
        %684 = vmatpush1.msra.mxu0 0.0
        %685 = vmatprep.subr.mxu0 0.0
        %686 = vmatpush1.msra.mxu0 0.0
        %687 = vmatprep.subr.mxu0 0.0
        %688 = vmatpush1.msra.mxu0 0.0
        %689 = vmatprep.subr.mxu0 0.0
        %690 = vmatpush1.msra.mxu0 0.0
        %691 = vmatprep.subr.mxu0 0.0
        %692 = vmatpush1.msra.mxu0 0.0
        %693 = vmatprep.mubr.f32.mxu0 0.0
        %694 = vmatmul.mubr.f32.gmra.mrb[0].mxu0 %v627
        %v695 = vpop.f32.mrb[0].mxu0
        %v696 = vadd.f32 0.0, %v695
        %v697 = vpop.f32.mrb[0].mxu0
        %698 = vdwg.mxu0
        %v699 = vrcp.pop %v622
        %v700 = vmul.f32 %v696, %v699
        %701 = vrot.lane.b32.xlu0 %v362, 112
        %v702 = vpop.permute.xlu0 %701
        %703 = vrot.lane.b32.xlu0 %v362, 80
        %v704 = vpop.permute.xlu0 %703
        %v705 = vsel %vm374, %v702, 0
        %v707 = vsel %vm374, %v704, 0
        %709 = vmatprep.subr.mxu0 0.0
        %710 = vmatpush1.xpose.msra.mxu0 %v707
        %711 = vmatprep.subr.mxu0 0.0
        %712 = vmatpush1.xpose.msra.mxu0 0.0
        %713 = vmatprep.subr.mxu0 0.0
        %714 = vmatpush1.xpose.msra.mxu0 0.0
        %715 = vmatprep.subr.mxu0 0.0
        %716 = vmatpush1.xpose.msra.mxu0 0.0
        %717 = vmatprep.subr.mxu0 0.0
        %718 = vmatpush1.xpose.msra.mxu0 0.0
        %719 = vmatprep.subr.mxu0 0.0
        %720 = vmatpush1.xpose.msra.mxu0 0.0
        %721 = vmatprep.subr.mxu0 0.0
        %722 = vmatpush1.xpose.msra.mxu0 0.0
        %723 = vmatprep.subr.mxu0 0.0
        %724 = vmatpush1.xpose.msra.mxu0 0.0
        %725 = vmatprep.subr.mxu0 0.0
        %726 = vmatpush1.xpose.msra.mxu0 0.0
        %727 = vmatprep.subr.mxu0 0.0
        %728 = vmatpush1.xpose.msra.mxu0 0.0
        %729 = vmatprep.subr.mxu0 0.0
        %730 = vmatpush1.xpose.msra.mxu0 0.0
        %731 = vmatprep.subr.mxu0 0.0
        %732 = vmatpush1.xpose.msra.mxu0 0.0
        %733 = vmatprep.subr.mxu0 0.0
        %734 = vmatpush1.xpose.msra.mxu0 0.0
        %735 = vmatprep.subr.mxu0 0.0
        %736 = vmatpush1.xpose.msra.mxu0 0.0
        %737 = vmatprep.subr.mxu0 0.0
        %738 = vmatpush1.xpose.msra.mxu0 0.0
        %739 = vmatprep.subr.mxu0 0.0
        %740 = vmatpush1.xpose.msra.mxu0 0.0
        %741 = vmatprep.subr.mxu0 0.0
        %742 = vmatpush1.xpose.msra.mxu0 0.0
        %743 = vmatprep.subr.mxu0 0.0
        %744 = vmatpush1.xpose.msra.mxu0 0.0
        %745 = vmatprep.subr.mxu0 0.0
        %746 = vmatpush1.xpose.msra.mxu0 0.0
        %747 = vmatprep.subr.mxu0 0.0
        %748 = vmatpush1.xpose.msra.mxu0 0.0
        %749 = vmatprep.subr.mxu0 0.0
        %750 = vmatpush1.xpose.msra.mxu0 0.0
        %751 = vmatprep.subr.mxu0 0.0
        %752 = vmatpush1.xpose.msra.mxu0 0.0
        %753 = vmatprep.subr.mxu0 0.0
        %754 = vmatpush1.xpose.msra.mxu0 0.0
        %755 = vmatprep.subr.mxu0 0.0
        %756 = vmatpush1.xpose.msra.mxu0 0.0
        %757 = vmatprep.subr.mxu0 0.0
        %758 = vmatpush1.xpose.msra.mxu0 0.0
        %759 = vmatprep.subr.mxu0 0.0
        %760 = vmatpush1.xpose.msra.mxu0 0.0
        %761 = vmatprep.subr.mxu0 0.0
        %762 = vmatpush1.xpose.msra.mxu0 0.0
        %763 = vmatprep.subr.mxu0 0.0
        %764 = vmatpush1.xpose.msra.mxu0 0.0
        %765 = vmatprep.subr.mxu0 0.0
        %766 = vmatpush1.xpose.msra.mxu0 0.0
        %767 = vmatprep.subr.mxu0 0.0
        %768 = vmatpush1.xpose.msra.mxu0 0.0
        %769 = vmatprep.subr.mxu0 0.0
        %770 = vmatpush1.xpose.msra.mxu0 0.0
        %771 = vmatprep.subr.mxu0 0.0
        %772 = vmatpush1.xpose.msra.mxu0 0.0
        %773 = vmatprep.mubr.f32.mxu0 0.0
        %774 = vmatmul.mubr.f32.gmra.mrb[0].mxu0 %v705
        %v775 = vpop.f32.mrb[0].mxu0
        %v776 = vadd.f32 %v369, %v775
        %v777 = vpop.f32.mrb[0].mxu0
        %778 = vdwg.mxu0
        %v779 = vsel %vm374, %v776, -inf
        %780 = vmax.xlane.f32.xlu0 %v779
        %v781 = vpop.xlane.xlu0 %780
        %v782 = vsub.f32 %v776, %v781
        %v783 = vmul.f32 %v782, 1.442695
        %v784 = vpow.pop %v783
        %v785 = vsel %vm374, %v784, 0.0
        %786 = vadd.xlane.f32.xlu0 %v785
        %v787 = vpop.xlane.xlu0 %786
        %788 = vrot.lane.b32.xlu0 %v362, 48
        %v789 = vpop.permute.xlu0 %788
        %v792 = vsel %vm374, %v784, 0
        %794 = vmatprep.subr.mxu0 0.0
        %795 = vmatpush1.msra.mxu0 %v789
        %796 = vmatprep.subr.mxu0 0.0
        %797 = vmatpush1.msra.mxu0 0.0
        %798 = vmatprep.subr.mxu0 0.0
        %799 = vmatpush1.msra.mxu0 0.0
        %800 = vmatprep.subr.mxu0 0.0
        %801 = vmatpush1.msra.mxu0 0.0
        %802 = vmatprep.subr.mxu0 0.0
        %803 = vmatpush1.msra.mxu0 0.0
        %804 = vmatprep.subr.mxu0 0.0
        %805 = vmatpush1.msra.mxu0 0.0
        %806 = vmatprep.subr.mxu0 0.0
        %807 = vmatpush1.msra.mxu0 0.0
        %808 = vmatprep.subr.mxu0 0.0
        %809 = vmatpush1.msra.mxu0 0.0
        %810 = vmatprep.subr.mxu0 0.0
        %811 = vmatpush1.msra.mxu0 0.0
        %812 = vmatprep.subr.mxu0 0.0
        %813 = vmatpush1.msra.mxu0 0.0
        %814 = vmatprep.subr.mxu0 0.0
        %815 = vmatpush1.msra.mxu0 0.0
        %816 = vmatprep.subr.mxu0 0.0
        %817 = vmatpush1.msra.mxu0 0.0
        %818 = vmatprep.subr.mxu0 0.0
        %819 = vmatpush1.msra.mxu0 0.0
        %820 = vmatprep.subr.mxu0 0.0
        %821 = vmatpush1.msra.mxu0 0.0
        %822 = vmatprep.subr.mxu0 0.0
        %823 = vmatpush1.msra.mxu0 0.0
        %824 = vmatprep.subr.mxu0 0.0
        %825 = vmatpush1.msra.mxu0 0.0
        %826 = vmatprep.subr.mxu0 0.0
        %827 = vmatpush1.msra.mxu0 0.0
        %828 = vmatprep.subr.mxu0 0.0
        %829 = vmatpush1.msra.mxu0 0.0
        %830 = vmatprep.subr.mxu0 0.0
        %831 = vmatpush1.msra.mxu0 0.0
        %832 = vmatprep.subr.mxu0 0.0
        %833 = vmatpush1.msra.mxu0 0.0
        %834 = vmatprep.subr.mxu0 0.0
        %835 = vmatpush1.msra.mxu0 0.0
        %836 = vmatprep.subr.mxu0 0.0
        %837 = vmatpush1.msra.mxu0 0.0
        %838 = vmatprep.subr.mxu0 0.0
        %839 = vmatpush1.msra.mxu0 0.0
        %840 = vmatprep.subr.mxu0 0.0
        %841 = vmatpush1.msra.mxu0 0.0
        %842 = vmatprep.subr.mxu0 0.0
        %843 = vmatpush1.msra.mxu0 0.0
        %844 = vmatprep.subr.mxu0 0.0
        %845 = vmatpush1.msra.mxu0 0.0
        %846 = vmatprep.subr.mxu0 0.0
        %847 = vmatpush1.msra.mxu0 0.0
        %848 = vmatprep.subr.mxu0 0.0
        %849 = vmatpush1.msra.mxu0 0.0
        %850 = vmatprep.subr.mxu0 0.0
        %851 = vmatpush1.msra.mxu0 0.0
        %852 = vmatprep.subr.mxu0 0.0
        %853 = vmatpush1.msra.mxu0 0.0
        %854 = vmatprep.subr.mxu0 0.0
        %855 = vmatpush1.msra.mxu0 0.0
        %856 = vmatprep.subr.mxu0 0.0
        %857 = vmatpush1.msra.mxu0 0.0
        %858 = vmatprep.mubr.f32.mxu0 0.0
        %859 = vmatmul.mubr.f32.gmra.mrb[0].mxu0 %v792
        %v860 = vpop.f32.mrb[0].mxu0
        %v861 = vadd.f32 0.0, %v860
        %v862 = vpop.f32.mrb[0].mxu0
        %863 = vdwg.mxu0
        %v864 = vrcp.pop %v787
        %v865 = vmul.f32 %v861, %v864
        %866 = vrot.lane.b32.xlu0 %v362, 104
        %v867 = vpop.permute.xlu0 %866
        %868 = vrot.lane.b32.xlu0 %v362, 72
        %v869 = vpop.permute.xlu0 %868
        %v870 = vsel %vm374, %v867, 0
        %v872 = vsel %vm374, %v869, 0
        %874 = vmatprep.subr.mxu0 0.0
        %875 = vmatpush1.xpose.msra.mxu0 %v872
        %876 = vmatprep.subr.mxu0 0.0
        %877 = vmatpush1.xpose.msra.mxu0 0.0
        %878 = vmatprep.subr.mxu0 0.0
        %879 = vmatpush1.xpose.msra.mxu0 0.0
        %880 = vmatprep.subr.mxu0 0.0
        %881 = vmatpush1.xpose.msra.mxu0 0.0
        %882 = vmatprep.subr.mxu0 0.0
        %883 = vmatpush1.xpose.msra.mxu0 0.0
        %884 = vmatprep.subr.mxu0 0.0
        %885 = vmatpush1.xpose.msra.mxu0 0.0
        %886 = vmatprep.subr.mxu0 0.0
        %887 = vmatpush1.xpose.msra.mxu0 0.0
        %888 = vmatprep.subr.mxu0 0.0
        %889 = vmatpush1.xpose.msra.mxu0 0.0
        %890 = vmatprep.subr.mxu0 0.0
        %891 = vmatpush1.xpose.msra.mxu0 0.0
        %892 = vmatprep.subr.mxu0 0.0
        %893 = vmatpush1.xpose.msra.mxu0 0.0
        %894 = vmatprep.subr.mxu0 0.0
        %895 = vmatpush1.xpose.msra.mxu0 0.0
        %896 = vmatprep.subr.mxu0 0.0
        %897 = vmatpush1.xpose.msra.mxu0 0.0
        %898 = vmatprep.subr.mxu0 0.0
        %899 = vmatpush1.xpose.msra.mxu0 0.0
        %900 = vmatprep.subr.mxu0 0.0
        %901 = vmatpush1.xpose.msra.mxu0 0.0
        %902 = vmatprep.subr.mxu0 0.0
        %903 = vmatpush1.xpose.msra.mxu0 0.0
        %904 = vmatprep.subr.mxu0 0.0
        %905 = vmatpush1.xpose.msra.mxu0 0.0
        %906 = vmatprep.subr.mxu0 0.0
        %907 = vmatpush1.xpose.msra.mxu0 0.0
        %908 = vmatprep.subr.mxu0 0.0
        %909 = vmatpush1.xpose.msra.mxu0 0.0
        %910 = vmatprep.subr.mxu0 0.0
        %911 = vmatpush1.xpose.msra.mxu0 0.0
        %912 = vmatprep.subr.mxu0 0.0
        %913 = vmatpush1.xpose.msra.mxu0 0.0
        %914 = vmatprep.subr.mxu0 0.0
        %915 = vmatpush1.xpose.msra.mxu0 0.0
        %916 = vmatprep.subr.mxu0 0.0
        %917 = vmatpush1.xpose.msra.mxu0 0.0
        %918 = vmatprep.subr.mxu0 0.0
        %919 = vmatpush1.xpose.msra.mxu0 0.0
        %920 = vmatprep.subr.mxu0 0.0
        %921 = vmatpush1.xpose.msra.mxu0 0.0
        %922 = vmatprep.subr.mxu0 0.0
        %923 = vmatpush1.xpose.msra.mxu0 0.0
        %924 = vmatprep.subr.mxu0 0.0
        %925 = vmatpush1.xpose.msra.mxu0 0.0
        %926 = vmatprep.subr.mxu0 0.0
        %927 = vmatpush1.xpose.msra.mxu0 0.0
        %928 = vmatprep.subr.mxu0 0.0
        %929 = vmatpush1.xpose.msra.mxu0 0.0
        %930 = vmatprep.subr.mxu0 0.0
        %931 = vmatpush1.xpose.msra.mxu0 0.0
        %932 = vmatprep.subr.mxu0 0.0
        %933 = vmatpush1.xpose.msra.mxu0 0.0
        %934 = vmatprep.subr.mxu0 0.0
        %935 = vmatpush1.xpose.msra.mxu0 0.0
        %936 = vmatprep.subr.mxu0 0.0
        %937 = vmatpush1.xpose.msra.mxu0 0.0
        %938 = vmatprep.mubr.f32.mxu0 0.0
        %939 = vmatmul.mubr.f32.gmra.mrb[0].mxu0 %v870
        %v940 = vpop.f32.mrb[0].mxu0
        %v941 = vadd.f32 %v369, %v940
        %v942 = vpop.f32.mrb[0].mxu0
        %943 = vdwg.mxu0
        %v944 = vsel %vm374, %v941, -inf
        %945 = vmax.xlane.f32.xlu0 %v944
        %v946 = vpop.xlane.xlu0 %945
        %v947 = vsub.f32 %v941, %v946
        %v948 = vmul.f32 %v947, 1.442695
        %v949 = vpow.pop %v948
        %v950 = vsel %vm374, %v949, 0.0
        %951 = vadd.xlane.f32.xlu0 %v950
        %v952 = vpop.xlane.xlu0 %951
        %953 = vrot.lane.b32.xlu0 %v362, 40
        %v954 = vpop.permute.xlu0 %953
        %v957 = vsel %vm374, %v949, 0
        %959 = vmatprep.subr.mxu0 0.0
        %960 = vmatpush1.msra.mxu0 %v954
        %961 = vmatprep.subr.mxu0 0.0
        %962 = vmatpush1.msra.mxu0 0.0
        %963 = vmatprep.subr.mxu0 0.0
        %964 = vmatpush1.msra.mxu0 0.0
        %965 = vmatprep.subr.mxu0 0.0
        %966 = vmatpush1.msra.mxu0 0.0
        %967 = vmatprep.subr.mxu0 0.0
        %968 = vmatpush1.msra.mxu0 0.0
        %969 = vmatprep.subr.mxu0 0.0
        %970 = vmatpush1.msra.mxu0 0.0
        %971 = vmatprep.subr.mxu0 0.0
        %972 = vmatpush1.msra.mxu0 0.0
        %973 = vmatprep.subr.mxu0 0.0
        %974 = vmatpush1.msra.mxu0 0.0
        %975 = vmatprep.subr.mxu0 0.0
        %976 = vmatpush1.msra.mxu0 0.0
        %977 = vmatprep.subr.mxu0 0.0
        %978 = vmatpush1.msra.mxu0 0.0
        %979 = vmatprep.subr.mxu0 0.0
        %980 = vmatpush1.msra.mxu0 0.0
        %981 = vmatprep.subr.mxu0 0.0
        %982 = vmatpush1.msra.mxu0 0.0
        %983 = vmatprep.subr.mxu0 0.0
        %984 = vmatpush1.msra.mxu0 0.0
        %985 = vmatprep.subr.mxu0 0.0
        %986 = vmatpush1.msra.mxu0 0.0
        %987 = vmatprep.subr.mxu0 0.0
        %988 = vmatpush1.msra.mxu0 0.0
        %989 = vmatprep.subr.mxu0 0.0
        %990 = vmatpush1.msra.mxu0 0.0
        %991 = vmatprep.subr.mxu0 0.0
        %992 = vmatpush1.msra.mxu0 0.0
        %993 = vmatprep.subr.mxu0 0.0
        %994 = vmatpush1.msra.mxu0 0.0
        %995 = vmatprep.subr.mxu0 0.0
        %996 = vmatpush1.msra.mxu0 0.0
        %997 = vmatprep.subr.mxu0 0.0
        %998 = vmatpush1.msra.mxu0 0.0
        %999 = vmatprep.subr.mxu0 0.0
        %1000 = vmatpush1.msra.mxu0 0.0
        %1001 = vmatprep.subr.mxu0 0.0
        %1002 = vmatpush1.msra.mxu0 0.0
        %1003 = vmatprep.subr.mxu0 0.0
        %1004 = vmatpush1.msra.mxu0 0.0
        %1005 = vmatprep.subr.mxu0 0.0
        %1006 = vmatpush1.msra.mxu0 0.0
        %1007 = vmatprep.subr.mxu0 0.0
        %1008 = vmatpush1.msra.mxu0 0.0
        %1009 = vmatprep.subr.mxu0 0.0
        %1010 = vmatpush1.msra.mxu0 0.0
        %1011 = vmatprep.subr.mxu0 0.0
        %1012 = vmatpush1.msra.mxu0 0.0
        %1013 = vmatprep.subr.mxu0 0.0
        %1014 = vmatpush1.msra.mxu0 0.0
        %1015 = vmatprep.subr.mxu0 0.0
        %1016 = vmatpush1.msra.mxu0 0.0
        %1017 = vmatprep.subr.mxu0 0.0
        %1018 = vmatpush1.msra.mxu0 0.0
        %1019 = vmatprep.subr.mxu0 0.0
        %1020 = vmatpush1.msra.mxu0 0.0
        %1021 = vmatprep.subr.mxu0 0.0
        %1022 = vmatpush1.msra.mxu0 0.0
        %1023 = vmatprep.mubr.f32.mxu0 0.0
        %1024 = vmatmul.mubr.f32.gmra.mrb[0].mxu0 %v957
        %v1025 = vpop.f32.mrb[0].mxu0
        %v1026 = vadd.f32 0.0, %v1025
        %v1027 = vpop.f32.mrb[0].mxu0
        %1028 = vdwg.mxu0
        %v1029 = vrcp.pop %v952
        %v1030 = vmul.f32 %v1026, %v1029
        %1032 = vrot.lane.b32.xlu0 %v700, 8
        %v1033 = vpop.permute.xlu0 %1032
        %1036 = vrot.lane.b32.xlu0 %v865, 16
        %v1037 = vpop.permute.xlu0 %1036
        %1040 = vrot.lane.b32.xlu0 %v1030, 24
        %v1041 = vpop.permute.xlu0 %1040
        %v1043 = vsel %vm374, %v535, %v1033
        %vm1044 = vcmask 130048
        %v1045 = vsel %vm1044, %v1043, %v1037
        %vm1046 = vcmask 195584
        %v1047 = vsel %vm1046, %v1045, %v1041
        %1048 = vst.msk [vmem:[%s271] sm:$0xff] %vm291, %v1047
        %s1049 = sand.u32 %s148, 1
        %s1050 = scalar_lea.sflag [#allocation4], %s1049
        %s1051 = sand.u32 %s148, 1
        %s1052 = smul.addr %s1051, 8
        %s1053 = scalar_lea.vmem [#allocation7], %s1052
        // Predicated region
        $region45: #{tpu_custom_call.1} parent=35 // pred_check
          %p1054 = pneg %p158
        $region46: #{tpu_custom_call.1} parent=35 // pred_check_branch
          %1056 = sbr.rel (%p1054) target = $region48
        $region47: #{tpu_custom_call.1} parent=35 // pred_region
          %s1058 = ssub.s32 128, 128
          %1059 = vsyncadd %s1050, %s1058
          %s1060 = sadd.s32 %s27, %s26
          %s1061 = smul.addr %s1060, 128
          %s1062 = scalar_lea.hbm %s4, %s1061
          %s1064 = sshll.u32 %s1053, 4
          %s1065 = int_to_ptr.vmem [resolvable:$true] %s1064
          %1067 = dma.vmem_to_hbm [thread:$0]  %s1065, 128, %s1062, %s1050
        $region48: #{tpu_custom_call.1} parent=35 // pred_fallthru
          _
      $region36: #{tpu_custom_call.1} parent=5 // pred_fallthru
        _
      %p1068 = scmp.le.s32.totalorder 2, %s17
      // Predicated region
      $region49: #{tpu_custom_call.1} parent=5 // pred_check
        %p1069 = pneg %p1068
      $region50: #{tpu_custom_call.1} parent=5 // pred_check_branch
        %1071 = sbr.rel (%p1069) target = $region52
      $region51: #{tpu_custom_call.1} parent=5 // pred_region
        %s1072 = ssub.s32 %s17, 2
        // Predicated region
        $region53: #{tpu_custom_call.1} parent=51 // pred_check
          %p1073 = pneg %p164
        $region54: #{tpu_custom_call.1} parent=51 // pred_check_branch
          %1075 = sbr.rel (%p1073) target = $region56
        $region55: #{tpu_custom_call.1} parent=51 // pred_region
          %s1076 = sand.u32 %s149, 1
          %s1077 = scalar_lea.sflag [#allocation4], %s1076
          %s1078 = sand.u32 %s149, 1
          %s1079 = smul.addr %s1078, 8
          %s1080 = scalar_lea.vmem [#allocation7], %s1079
          %1081 = dma.done %s1077, 128
        $region56: #{tpu_custom_call.1} parent=51 // pred_fallthru
          _
      $region52: #{tpu_custom_call.1} parent=5 // pred_fallthru
        _
    $region6: #{tpu_custom_call.1} parent=1 // loop_footer
      %s21 = sadd.s32 1, %s17
    $region7: #{tpu_custom_call.1} parent=1 // loop_footer_branch
      %16 = sbr.rel target = $region3
    $region8: #{tpu_custom_call.1} parent=1 // loop_exit
      _
    %1082 = vsyncpa [#allocation3], 1
    %s1083 = scalar_lea.sflag [#allocation3], 1
    %1084 = vsyncpa %s1083, 1
    %1085 = vsyncpa [#allocation6], 1
    %1086 = vsyncpa [#allocation4], 1
    %s1087 = scalar_lea.sflag [#allocation4], 1
    %1088 = vsyncpa %s1087, 1

</llo_original>
